<compile_context>
chip_gen: v6e
topology: v6e:2x2x1
jax: 0.10.0
libtpu: 0.0.40
codegen_flags: <defaults>
</compile_context>

<pallas_src>
import jax
import jax.numpy as jnp
from jax import lax
from jax.experimental import pallas as pl
from jax.experimental.pallas import tpu as pltpu


# ----------------------------- kernels ------------------------------------- #

def _conv_stats_kernel(xT_ref, w_ref, y_ref, psum_ref, pssq_ref):
    """Pass 1: y[Cout, tm] = W @ xcolT tile; write per-tile channel sum / sumsq."""
    y = jnp.dot(w_ref[...], xT_ref[...], preferred_element_type=jnp.float32)
    y_ref[...] = y
    psum_ref[0, :, :] = jnp.sum(y, axis=1, keepdims=True)
    pssq_ref[0, :, :] = jnp.sum(y * y, axis=1, keepdims=True)


def _bn_relu_kernel(y_ref, scale_ref, offset_ref, o_ref):
    """Pass 2: out[n, :, hw-tile] = relu(y * scale + offset), final layout."""
    out = y_ref[...] * scale_ref[...] + offset_ref[...]
    o_ref[0, :, :] = jnp.maximum(out, 0.0).astype(o_ref.dtype)


# ----------------------------- helpers -------------------------------------- #

def _round_up(a, b):
    return ((a + b - 1) // b) * b


def _tpu_vmem_capacity_bytes():
    """Per-core VMEM capacity; conservative fallback covers v7x (64 MiB / TC)."""
    try:
        return int(pltpu.get_tpu_info().vmem_capacity_bytes)
    except Exception:
        return 64 * 1024 * 1024


def _pick_tile_m(M, Kp, Cout, budget_bytes, cap=16384):
    """Largest 128-multiple M-tile whose double-buffered f32 footprint fits budget."""
    per_col = 4 * 2 * (Kp + 2 * Cout)              # xcol tile + y tile, x2 buffers
    tm = (budget_bytes // per_col) // 128 * 128
    tm = max(128, min(cap, tm))
    m128 = _round_up(M, 128)
    tm = min(tm, m128)
    # shrink if padding M up to a tile multiple would waste > ~12% of the work
    while tm > 128 and (_round_up(m128, tm) - m128) * 8 > _round_up(m128, tm):
        tm -= 128
    return tm


def _largest_aligned_divisor(P, cap):
    """Largest multiple of 128 that divides P (itself a 128 multiple) and is <= cap."""
    q = P // 128
    best, d = 1, 1
    while d * d <= q:
        if q % d == 0:
            for f in (d, q // d):
                if f * 128 <= cap:
                    best = max(best, f)
        d += 1
    return best * 128


# ----------------------------- wrapper -------------------------------------- #

def downsampling_block(x_nchw, weight, bias, gamma, beta, eps=1e-5):
    """Conv2d(3x3, stride 2, pad 1) + BatchNorm2d(train mode) + ReLU.

    x_nchw : (N, Cin, H, W) f32
    weight : (Cout, Cin, 3, 3) f32  (PyTorch layout)
    bias   : (Cout,) f32            (cancels exactly under train-mode BN)
    gamma  : (Cout,) f32
    beta   : (Cout,) f32
    returns: (N, Cout, Ho, Wo) f32
    """
    del bias  # cancels exactly with the BN mean subtraction (forward unchanged)

    N, Cin, H, W = x_nchw.shape
    Cout = weight.shape[0]
    Ho = (H + 2 - 3) // 2 + 1
    Wo = (W + 2 - 3) // 2 + 1
    HoWo = Ho * Wo
    M = N * HoWo                       # true number of output positions
    K = 9 * Cin
    Kp = _round_up(K, 8)               # sublane-aligned contraction dim
    P = _round_up(HoWo, 128)           # per-sample lane-padded spatial size

    # --- glue (XLA): padded NCHW -> transposed, per-sample-padded im2col ------
    # TODO(synk): replace with in-kernel manual slab DMA (memory_space=pl.ANY).
    xp = jnp.pad(x_nchw.astype(jnp.float32), ((0, 0), (0, 0), (1, 1), (1, 1)))
    taps = []
    for kh in range(3):
        for kw in range(3):
            p = xp[:, :, kh:kh + 2 * Ho:2, kw:kw + 2 * Wo:2]      # (N, Cin, Ho, Wo)
            taps.append(jnp.transpose(p, (1, 0, 2, 3)).reshape(Cin, N, HoWo))
    xcol = jnp.concatenate(taps, axis=0)                           # (K, N, HoWo)
    if P != HoWo:
        xcol = jnp.pad(xcol, ((0, 0), (0, 0), (0, P - HoWo)))      # zero cols -> 0 stats
    xcol = xcol.reshape(K, N * P)
    if Kp != K:
        xcol = jnp.pad(xcol, ((0, Kp - K), (0, 0)))                # zero rows -> no-op

    # weight (Cout, Cin, 3, 3) -> (Cout, K); K index = (kh*3+kw)*Cin + cin; pad to Kp
    w2 = jnp.transpose(weight, (0, 2, 3, 1)).reshape(Cout, K).astype(jnp.float32)
    if Kp != K:
        w2 = jnp.pad(w2, ((0, 0), (0, Kp - K)))

    # --- generation-aware tiling ----------------------------------------------
    vmem_cap = _tpu_vmem_capacity_bytes()
    budget = max(8 << 20, min(int(vmem_cap * 0.35), 40 << 20))
    vmem_limit = int(min(vmem_cap - (8 << 20), budget + (24 << 20)))

    Mtot = N * P
    tm = _pick_tile_m(Mtot, Kp, Cout, budget)
    M_pad = _round_up(Mtot, tm)
    if M_pad != Mtot:
        xcol = jnp.pad(xcol, ((0, 0), (0, M_pad - Mtot)))
    n_tiles = M_pad // tm

    # --- pass 1: conv (MXU matmul) + per-tile channel sum / sum-of-squares ----
    y_T, psum, pssq = pl.pallas_call(
        _conv_stats_kernel,
        out_shape=(
            jax.ShapeDtypeStruct((Cout, M_pad), jnp.float32),
            jax.ShapeDtypeStruct((n_tiles, Cout, 1), jnp.float32),
            jax.ShapeDtypeStruct((n_tiles, Cout, 1), jnp.float32),
        ),
        grid=(n_tiles,),
        in_specs=[
            pl.BlockSpec((Kp, tm), lambda i: (0, i)),      # im2col tile (lane-dense M)
            pl.BlockSpec((Cout, Kp), lambda i: (0, 0)),    # weights resident
        ],
        out_specs=(
            pl.BlockSpec((Cout, tm), lambda i: (0, i)),    # y tile
            pl.BlockSpec((1, Cout, 1), lambda i: (i, 0, 0)),   # per-tile sum
            pl.BlockSpec((1, Cout, 1), lambda i: (i, 0, 0)),   # per-tile sumsq
        ),
        compiler_params=pltpu.CompilerParams(
            dimension_semantics=("parallel",),             # fully parallel (v7x 2-TC ok)
            vmem_limit_bytes=vmem_limit),
        cost_estimate=pl.CostEstimate(
            flops=2 * Cout * Kp * M_pad,
            transcendentals=0,
            bytes_accessed=4 * (Kp * M_pad + Cout * M_pad + Cout * Kp
                                + 2 * n_tiles * Cout)),
    )(xcol, w2)

    # --- tiny per-channel fold (Cout elements, plain JAX) ----------------------
    # NOTE: E[y^2]-E[y]^2 in f32; fine at these sizes, consider centered/shifted
    # accumulation for very large M.
    ch_sum = jnp.sum(psum[:, :, 0], axis=0)
    ch_ssq = jnp.sum(pssq[:, :, 0], axis=0)
    mean = ch_sum / M
    var = jnp.maximum(ch_ssq / M - mean * mean, 0.0)       # biased (train-mode), clamped
    scale = gamma.astype(jnp.float32) * lax.rsqrt(var + eps)
    offset = beta.astype(jnp.float32) - mean * scale
    scale2 = scale.reshape(Cout, 1)
    offset2 = offset.reshape(Cout, 1)

    # --- pass 2: normalize + ReLU, writing the final (N, Cout, HoWo) layout ----
    t_hw = P if P <= 16384 else _largest_aligned_divisor(P, 16384)
    g_hw = P // t_hw
    out_pad = pl.pallas_call(
        _bn_relu_kernel,
        out_shape=jax.ShapeDtypeStruct((N, Cout, P), jnp.float32),
        grid=(N, g_hw),
        in_specs=[
            pl.BlockSpec((Cout, t_hw), lambda n, j: (0, n * g_hw + j)),
            pl.BlockSpec((Cout, 1), lambda n, j: (0, 0)),
            pl.BlockSpec((Cout, 1), lambda n, j: (0, 0)),
        ],
        out_specs=pl.BlockSpec((1, Cout, t_hw), lambda n, j: (n, 0, j)),
        compiler_params=pltpu.CompilerParams(
            dimension_semantics=("parallel", "parallel"),
            vmem_limit_bytes=vmem_limit),
        cost_estimate=pl.CostEstimate(
            flops=3 * Cout * N * P,
            transcendentals=0,
            bytes_accessed=4 * (2 * Cout * N * P + 2 * Cout)),
    )(y_T, scale2, offset2)

    out = out_pad if P == HoWo else out_pad[:, :, :HoWo]
    return out.reshape(N, Cout, Ho, Wo)


# ----------------------------- reference & test ----------------------------- #

def _reference(x, weight, bias, gamma, beta, eps=1e-5):
    y = lax.conv_general_dilated(
        x, weight, window_strides=(2, 2), padding=((1, 1), (1, 1)),
        dimension_numbers=("NCHW", "OIHW", "NCHW"))
    y = y + bias.reshape(1, -1, 1, 1)
    mean = jnp.mean(y, axis=(0, 2, 3), keepdims=True)
    var = jnp.mean((y - mean) ** 2, axis=(0, 2, 3), keepdims=True)
    yhat = (y - mean) * lax.rsqrt(var + eps)
    out = gamma.reshape(1, -1, 1, 1) * yhat + beta.reshape(1, -1, 1, 1)
    return jnp.maximum(out, 0.0)


if __name__ == "__main__":
    key = jax.random.PRNGKey(0)
    k_x, k_w, k_b, k_g, k_be = jax.random.split(key, 5)

    # DownsamplingBlock(in_features=4, out_features=8), input NCHW (2, 4, 16, 16)
    N, Cin, H, W = 2, 4, 16, 16
    Cout = 8

    x = jax.random.normal(k_x, (N, Cin, H, W), dtype=jnp.float32)

    fan_in = Cin * 3 * 3
    w_scale = (2.0 / fan_in) ** 0.5
    weight = w_scale * jax.random.normal(k_w, (Cout, Cin, 3, 3), dtype=jnp.float32)
    bias = 0.1 * jax.random.normal(k_b, (Cout,), dtype=jnp.float32)
    gamma = 1.0 + 0.05 * jax.random.normal(k_g, (Cout,), dtype=jnp.float32)
    beta = 0.05 * jax.random.normal(k_be, (Cout,), dtype=jnp.float32)

    y = downsampling_block(x, weight, bias, gamma, beta)
    jax.block_until_ready(y)

    assert y.shape == (N, Cout, H // 2, W // 2), y.shape

    y_ref = _reference(x, weight, bias, gamma, beta)
    max_err = float(jnp.max(jnp.abs(y - y_ref)))
    assert max_err < 1e-3, f"max abs error vs reference: {max_err}"

    print("KERNEL_OK")
</pallas_src>

<mosaic_0001>
module attributes {stable_mosaic.version = 11 : i64} {
  func.func @_conv_stats_kernel(%arg0: i32, %arg1: memref<40x256xf32, #tpu.memory_space<vmem>>, %arg2: memref<8x40xf32, #tpu.memory_space<vmem>>, %arg3: memref<8x256xf32, #tpu.memory_space<vmem>>, %arg4: memref<1x8x1xf32, #tpu.memory_space<vmem>>, %arg5: memref<1x8x1xf32, #tpu.memory_space<vmem>>) attributes {dimension_semantics = [#tpu.dimension_semantics<parallel>], iteration_bounds = array<i64: 1>, scalar_prefetch = 0 : i64, scratch_operands = 0 : i64, tpu.core_type = #tpu.core_type<tc>, window_params = [{transform_indices = @transform_0, window_bounds = array<i64: 40, 256>}, {pipeline_mode = #tpu.pipeline_mode<synchronous>, transform_indices = @transform_1, window_bounds = array<i64: 8, 40>}, {transform_indices = @transform_2, window_bounds = array<i64: 8, 256>}, {transform_indices = @transform_3, window_bounds = array<i64: 1, 8, 1>}, {transform_indices = @transform_4, window_bounds = array<i64: 1, 8, 1>}]} {
    %c0 = arith.constant 0 : index
    %c0_0 = arith.constant 0 : index
    %0 = vector.load %arg2[%c0, %c0_0] : memref<8x40xf32, #tpu.memory_space<vmem>>, vector<8x40xf32>
    %c0_1 = arith.constant 0 : index
    %c0_2 = arith.constant 0 : index
    %1 = vector.load %arg1[%c0_1, %c0_2] : memref<40x256xf32, #tpu.memory_space<vmem>>, vector<40x256xf32>
    %cst = arith.constant dense<0.000000e+00> : vector<8x256xf32>
    %2 = tpu.matmul %0, %1, %cst {dimension_numbers = #tpu.dot_dimension_numbers<[1], [0], [0], [1], [0, 0, 1, 1], [], []>} : vector<8x40xf32>, vector<40x256xf32>, vector<8x256xf32> -> vector<8x256xf32>
    %c0_3 = arith.constant 0 : index
    %c0_4 = arith.constant 0 : index
    %3 = vector.load %arg3[%c0_3, %c0_4] : memref<8x256xf32, #tpu.memory_space<vmem>>, vector<8x256xf32>
    tpu.vector_store %arg3[%c0_3, %c0_4], %2 {strides = array<i32>} : memref<8x256xf32, #tpu.memory_space<vmem>>, vector<8x256xf32>,
    %cst_5 = arith.constant dense<0.000000e+00> : vector<8xf32>
    %4 = vector.multi_reduction <add>, %2, %cst_5 [1] : vector<8x256xf32> to vector<8xf32>
    %5 = vector.shape_cast %4 : vector<8xf32> to vector<8x1xf32>
    %c0_6 = arith.constant 0 : index
    %c0_7 = arith.constant 0 : index
    %c0_8 = arith.constant 0 : index
    %6 = vector.load %arg4[%c0_6, %c0_7, %c0_8] : memref<1x8x1xf32, #tpu.memory_space<vmem>>, vector<1x8x1xf32>
    %7 = vector.shape_cast %6 : vector<1x8x1xf32> to vector<8x1xf32>
    %8 = vector.shape_cast %5 : vector<8x1xf32> to vector<1x8x1xf32>
    tpu.vector_store %arg4[%c0_6, %c0_7, %c0_8], %8 {strides = array<i32>} : memref<1x8x1xf32, #tpu.memory_space<vmem>>, vector<1x8x1xf32>,
    %9 = arith.mulf %2, %2 : vector<8x256xf32>
    %cst_9 = arith.constant dense<0.000000e+00> : vector<8xf32>
    %10 = vector.multi_reduction <add>, %9, %cst_9 [1] : vector<8x256xf32> to vector<8xf32>
    %11 = vector.shape_cast %10 : vector<8xf32> to vector<8x1xf32>
    %c0_10 = arith.constant 0 : index
    %c0_11 = arith.constant 0 : index
    %c0_12 = arith.constant 0 : index
    %12 = vector.load %arg5[%c0_10, %c0_11, %c0_12] : memref<1x8x1xf32, #tpu.memory_space<vmem>>, vector<1x8x1xf32>
    %13 = vector.shape_cast %12 : vector<1x8x1xf32> to vector<8x1xf32>
    %14 = vector.shape_cast %11 : vector<8x1xf32> to vector<1x8x1xf32>
    tpu.vector_store %arg5[%c0_10, %c0_11, %c0_12], %14 {strides = array<i32>} : memref<1x8x1xf32, #tpu.memory_space<vmem>>, vector<1x8x1xf32>,
    return
  }
  func.func @transform_0(%arg0: i32) -> (i32, i32) {
    %c0_i32 = arith.constant 0 : i32
    %c0_i32_0 = arith.constant 0 : i32
    return %c0_i32, %arg0 : i32, i32
  }
  func.func @transform_1(%arg0: i32) -> (i32, i32) {
    %c0_i32 = arith.constant 0 : i32
    %c0_i32_0 = arith.constant 0 : i32
    %c0_i32_1 = arith.constant 0 : i32
    return %c0_i32, %c0_i32_0 : i32, i32
  }
  func.func @transform_2(%arg0: i32) -> (i32, i32) {
    %c0_i32 = arith.constant 0 : i32
    %c0_i32_0 = arith.constant 0 : i32
    return %c0_i32, %arg0 : i32, i32
  }
  func.func @transform_3(%arg0: i32) -> (i32, i32, i32) {
    %c0_i32 = arith.constant 0 : i32
    %c0_i32_0 = arith.constant 0 : i32
    %c0_i32_1 = arith.constant 0 : i32
    return %arg0, %c0_i32, %c0_i32_0 : i32, i32, i32
  }
  func.func @transform_4(%arg0: i32) -> (i32, i32, i32) {
    %c0_i32 = arith.constant 0 : i32
    %c0_i32_0 = arith.constant 0 : i32
    %c0_i32_1 = arith.constant 0 : i32
    return %arg0, %c0_i32, %c0_i32_0 : i32, i32, i32
  }
}

</mosaic_0001>

<llo_original>
// kernel: tpu_custom_call.1
$region0: #{tpu_custom_call.1}
  #allocation0 [shape = 'u32[]', space=smem, size = 0x4, offset = 0x4, fixed_abs, tag = 'smem constant byte address 0x4 - core index']
  #allocation1 [shape = 'u32[144,128]{1,0:T(1,128)}', space=vmem, size = 0x12000, scoped, tag = 'internal scratch']
  %s0 = inlined_call_operand.hbm [shape: f32[40,256], index: 0, kind: input, shape index: {}]
  %s1 = inlined_call_operand.hbm [shape: f32[8,40], index: 1, kind: input, shape index: {}]
  %s2 = inlined_call_operand.hbm [shape: f32[8,256], index: 2, kind: output, shape index: {0}]
  %s3 = inlined_call_operand.vmem [shape: f32[1,8,1], index: 3, kind: output, shape index: {1}]
  %s4 = inlined_call_operand.vmem [shape: f32[1,8,1], index: 4, kind: output, shape index: {2}]
  %5 = xla_tuple %s2, %s3, %s4
  %s6 = sld [smem:[#allocation0]]
  $region42: #{tpu_custom_call.1} parent=0
    _
  %s8 = ssub.s32 1, %s6
  %s9 = scalar_select 0, %s8, %s6
  $region1: #{tpu_custom_call.1} parent=0
    #allocation2 [shape = 'u8[40960]{0}', space=vmem, size = 0xa000, scoped, tag = 'input window, operand 0, single buffered']
    #allocation3 [shape = 's32[1]{0}', space=sflag, size = 0x4, scoped, tag = 'scoped memory for tpu_custom_call.1']
    #allocation4 [shape = 's32[1]{0}', space=sflag, size = 0x4, scoped, tag = 'scoped memory for tpu_custom_call.1']
    #allocation5 [shape = 'u8[4096]{0}', space=vmem, size = 0x1000, scoped, tag = 'input window, operand 1, single buffered']
    #allocation6 [shape = 's32[1]{0}', space=sflag, size = 0x4, scoped, tag = 'scoped memory for tpu_custom_call.1']
    #allocation7 [shape = 'u8[8192]{0}', space=vmem, size = 0x2000, scoped, tag = 'output window, operand 0, single buffered']
    %10 = vsyncpa [#allocation3], 0
    %11 = vsyncpa [#allocation6], 0
    %12 = vsyncpa [#allocation4], 0
    // Predicated region
    $region2: #{tpu_custom_call.1} parent=1 // pred_check
      _
    $region3: #{tpu_custom_call.1} parent=1 // pred_check_branch
      %14 = sbr.rel (0) target = $region5
    $region4: #{tpu_custom_call.1} parent=1 // pred_region
      %s16 = ssub.s32 1280, 1280
      %17 = vsyncadd [#allocation3], %s16
      %s18 = sshll.u32 [#allocation2], 4
      %s19 = int_to_ptr.vmem [resolvable:$true] %s18
      %24 = dma.hbm_to_vmem [thread:$0]  %s0, 1280, %s19, [#allocation3], 256, 256, 16
    $region5: #{tpu_custom_call.1} parent=1 // pred_fallthru
      _
    // Predicated region
    $region6: #{tpu_custom_call.1} parent=1 // pred_check
      _
    $region7: #{tpu_custom_call.1} parent=1 // pred_check_branch
      %26 = sbr.rel (0) target = $region9
    $region8: #{tpu_custom_call.1} parent=1 // pred_region
      %s28 = ssub.s32 128, 128
      %29 = vsyncadd [#allocation6], %s28
      %s31 = sshll.u32 [#allocation5], 4
      %s32 = int_to_ptr.vmem [resolvable:$true] %s31
      %34 = dma.hbm_to_vmem [thread:$0]  %s1, 128, %s32, [#allocation6]
    $region9: #{tpu_custom_call.1} parent=1 // pred_fallthru
      _
    // Predicated region
    $region10: #{tpu_custom_call.1} parent=1 // pred_check
      _
    $region11: #{tpu_custom_call.1} parent=1 // pred_check_branch
      %36 = sbr.rel (0) target = $region13
    $region12: #{tpu_custom_call.1} parent=1 // pred_region
      %37 = dma.done [#allocation3], 1280
    $region13: #{tpu_custom_call.1} parent=1 // pred_fallthru
      _
    // Predicated region
    $region14: #{tpu_custom_call.1} parent=1 // pred_check
      _
    $region15: #{tpu_custom_call.1} parent=1 // pred_check_branch
      %39 = sbr.rel (0) target = $region17
    $region16: #{tpu_custom_call.1} parent=1 // pred_region
      %40 = dma.done [#allocation6], 128
    $region17: #{tpu_custom_call.1} parent=1 // pred_fallthru
      _
    %v41 = vld [vmem:[#allocation5] sm:$0xff]
    %v42 = vld [vmem:[#allocation2] sm:$0xff]
    %v43 = vld [vmem:[#allocation2 + $0x8] sm:$0xff]
    %v44 = vld [vmem:[#allocation2 + $0x10] sm:$0xff]
    %v45 = vld [vmem:[#allocation2 + $0x18] sm:$0xff]
    %v46 = vld [vmem:[#allocation2 + $0x20] sm:$0xff]
    %v47 = vld [vmem:[#allocation2 + $0x28] sm:$0xff]
    %v48 = vld [vmem:[#allocation2 + $0x30] sm:$0xff]
    %v49 = vld [vmem:[#allocation2 + $0x38] sm:$0xff]
    %v50 = vld [vmem:[#allocation2 + $0x40] sm:$0xff]
    %v51 = vld [vmem:[#allocation2 + $0x48] sm:$0xff]
    %vm52 = vcmask 326656
    %v54 = vsel %vm52, %v41, 0
    %56 = vmatprep.subr.mxu0 0.0
    %57 = vmatpush1.msra.mxu0 0.0
    %58 = vmatprep.subr.mxu0 0.0
    %59 = vmatpush1.msra.mxu0 0.0
    %60 = vmatprep.subr.mxu0 0.0
    %61 = vmatpush1.msra.mxu0 0.0
    %62 = vmatprep.subr.mxu0 0.0
    %63 = vmatpush1.msra.mxu0 0.0
    %64 = vmatprep.subr.mxu0 0.0
    %65 = vmatpush1.msra.mxu0 0.0
    %66 = vmatprep.subr.mxu0 0.0
    %67 = vmatpush1.msra.mxu0 0.0
    %68 = vmatprep.subr.mxu0 0.0
    %69 = vmatpush1.msra.mxu0 0.0
    %70 = vmatprep.subr.mxu0 0.0
    %71 = vmatpush1.msra.mxu0 0.0
    %72 = vmatprep.subr.mxu0 0.0
    %73 = vmatpush1.msra.mxu0 0.0
    %74 = vmatprep.subr.mxu0 0.0
    %75 = vmatpush1.msra.mxu0 0.0
    %76 = vmatprep.subr.mxu0 0.0
    %77 = vmatpush1.msra.mxu0 0.0
    %78 = vmatprep.subr.mxu0 %v51
    %79 = vmatpush1.msra.mxu0 %v50
    %80 = vmatprep.subr.mxu0 %v49
    %81 = vmatpush1.msra.mxu0 %v48
    %82 = vmatprep.subr.mxu0 %v47
    %83 = vmatpush1.msra.mxu0 %v46
    %84 = vmatprep.subr.mxu0 %v45
    %85 = vmatpush1.msra.mxu0 %v44
    %86 = vmatprep.subr.mxu0 %v43
    %87 = vmatpush1.msra.mxu0 %v42
    %88 = vmatprep.subr.mxu0 0.0
    %89 = vmatpush2.msra.mxu0 0.0
    %90 = vmatprep.subr.mxu0 0.0
    %91 = vmatpush2.msra.mxu0 0.0
    %92 = vmatprep.subr.mxu0 0.0
    %93 = vmatpush2.msra.mxu0 0.0
    %94 = vmatprep.subr.mxu0 0.0
    %95 = vmatpush2.msra.mxu0 0.0
    %96 = vmatprep.subr.mxu0 0.0
    %97 = vmatpush2.msra.mxu0 0.0
    %98 = vmatprep.subr.mxu0 0.0
    %99 = vmatpush2.msra.mxu0 0.0
    %100 = vmatprep.subr.mxu0 0.0
    %101 = vmatpush2.msra.mxu0 0.0
    %102 = vmatprep.subr.mxu0 0.0
    %103 = vmatpush2.msra.mxu0 0.0
    %104 = vmatprep.subr.mxu0 0.0
    %105 = vmatpush2.msra.mxu0 0.0
    %106 = vmatprep.subr.mxu0 0.0
    %107 = vmatpush2.msra.mxu0 0.0
    %108 = vmatprep.subr.mxu0 0.0
    %109 = vmatpush2.msra.mxu0 0.0
    %110 = vmatprep.subr.mxu0 0.0
    %111 = vmatpush2.msra.mxu0 0.0
    %112 = vmatprep.subr.mxu0 0.0
    %113 = vmatpush2.msra.mxu0 0.0
    %114 = vmatprep.subr.mxu0 0.0
    %115 = vmatpush2.msra.mxu0 0.0
    %116 = vmatprep.subr.mxu0 0.0
    %117 = vmatpush2.msra.mxu0 0.0
    %118 = vmatprep.subr.mxu0 0.0
    %119 = vmatpush2.msra.mxu0 0.0
    %120 = vmatprep.mubr.f32.mxu0 0.0
    %121 = vmatmul.mubr.f32.gmra.mxu0 %v54
    %v122 = vpop.f32.mrf.mxu0
    %v123 = vadd.f32 0.0, %v122
    %v124 = vpop.f32.mrf.mxu0
    %v125 = vadd.f32 0.0, %v124
    %126 = vdwg.mxu0
    %127 = vst [vmem:[#allocation7] sm:$0xff] %v123
    %128 = vst [vmem:[#allocation7 + $0x8] sm:$0xff] %v125
    %v129 = vadd.f32 %v123, %v125
    %130 = vadd.xlane.f32.xlu0 %v129
    %v131 = vpop.xlane.xlu0 %130
    %vm132 = vcmask 7168
    %133 = vst.msk [vmem:[%s3] sm:$0xff] %vm132, %v131
    %v134 = vmul.f32 %v123, %v123
    %v135 = vmul.f32 %v125, %v125
    %v136 = vadd.f32 %v134, %v135
    %137 = vadd.xlane.f32.xlu0 %v136
    %v138 = vpop.xlane.xlu0 %137
    %139 = vst.msk [vmem:[%s4] sm:$0xff] %vm132, %v138
    // Predicated region
    $region18: #{tpu_custom_call.1} parent=1 // pred_check
      _
    $region19: #{tpu_custom_call.1} parent=1 // pred_check_branch
      %141 = sbr.rel (0) target = $region21
    $region20: #{tpu_custom_call.1} parent=1 // pred_region
      %s143 = ssub.s32 256, 256
      %144 = vsyncadd [#allocation4], %s143
      %s146 = sshll.u32 [#allocation7], 4
      %s147 = int_to_ptr.vmem [resolvable:$true] %s146
      %149 = dma.vmem_to_hbm [thread:$0]  %s147, 256, %s2, [#allocation4]
    $region21: #{tpu_custom_call.1} parent=1 // pred_fallthru
      _
    // Predicated region
    $region22: #{tpu_custom_call.1} parent=1 // pred_check
      _
    $region23: #{tpu_custom_call.1} parent=1 // pred_check_branch
      %151 = sbr.rel (0) target = $region25
    $region24: #{tpu_custom_call.1} parent=1 // pred_region
      _
    $region25: #{tpu_custom_call.1} parent=1 // pred_fallthru
      _
    // Predicated region
    $region26: #{tpu_custom_call.1} parent=1 // pred_check
      _
    $region27: #{tpu_custom_call.1} parent=1 // pred_check_branch
      %153 = sbr.rel (0) target = $region29
    $region28: #{tpu_custom_call.1} parent=1 // pred_region
      _
    $region29: #{tpu_custom_call.1} parent=1 // pred_fallthru
      _
    // Predicated region
    $region30: #{tpu_custom_call.1} parent=1 // pred_check
      _
    $region31: #{tpu_custom_call.1} parent=1 // pred_check_branch
      %155 = sbr.rel (0) target = $region33
    $region32: #{tpu_custom_call.1} parent=1 // pred_region
      %156 = dma.done [#allocation4], 256
    $region33: #{tpu_custom_call.1} parent=1 // pred_fallthru
      _
    // Predicated region
    $region34: #{tpu_custom_call.1} parent=1 // pred_check
      _
    $region35: #{tpu_custom_call.1} parent=1 // pred_check_branch
      %158 = sbr.rel (0) target = $region37
    $region36: #{tpu_custom_call.1} parent=1 // pred_region
      _
    $region37: #{tpu_custom_call.1} parent=1 // pred_fallthru
      _
    // Predicated region
    $region38: #{tpu_custom_call.1} parent=1 // pred_check
      _
    $region39: #{tpu_custom_call.1} parent=1 // pred_check_branch
      %160 = sbr.rel (0) target = $region41
    $region40: #{tpu_custom_call.1} parent=1 // pred_region
      _
    $region41: #{tpu_custom_call.1} parent=1 // pred_fallthru
      _
    %161 = vsyncpa [#allocation3], 1
    %162 = vsyncpa [#allocation6], 1
    %163 = vsyncpa [#allocation4], 1

</llo_original>
